<compile_context>
chip_gen: v7x
topology: tpu7x:2x2x1
jax: 0.10.0
libtpu: 0.0.40
codegen_flags: <defaults>
</compile_context>

<pallas_src>
import math
from functools import partial

import jax
import jax.numpy as jnp
from jax.experimental import pallas as pl
from jax.experimental.pallas import tpu as pltpu

BN_EPS = 1e-5
LANE = 128      # lane width: last dim of every block padded to this
SUBLANE = 8     # sublane width: batch padded to this


def _round_up(n, m):
    return ((n + m - 1) // m) * m


def fused_mlp_kernel(*refs, num_layers, b_real, b_pad):
    """All MLP layers fused: Linear + ReLU + BN(train) per layer, in VMEM."""
    x_ref = refs[0]
    o_ref = refs[-1]
    layer_refs = refs[1:-1]           # 4 refs per layer: w, b, gamma, beta

    inv_b = 1.0 / float(b_real)       # static scalar
    h = x_ref[...].astype(jnp.float32)

    # Mask for padded batch rows so BN stats are computed over the real batch
    # only (needed in general; a no-op when b_pad == b_real).
    if b_pad > b_real:
        row = jax.lax.broadcasted_iota(jnp.int32, (b_pad, 1), 0)
        row_mask = (row < b_real).astype(jnp.float32)
    else:
        row_mask = None

    for layer in range(num_layers):   # static unrolled loop over layers
        w_ref, bias_ref, gamma_ref, beta_ref = layer_refs[4 * layer: 4 * layer + 4]

        # Linear: [B, din] @ [din, dout] on the MXU, f32 accumulate, + bias.
        y = jnp.dot(h, w_ref[...], preferred_element_type=jnp.float32)
        y = y + bias_ref[...]
        # ReLU (VPU)
        y = jnp.maximum(y, 0.0)
        if row_mask is not None:
            y = y * row_mask

        # BatchNorm1d (training): one-pass biased mean/var over the batch axis.
        s = jnp.sum(y, axis=0, keepdims=True)
        sq = jnp.sum(y * y, axis=0, keepdims=True)
        mean = s * inv_b
        var = jnp.maximum(sq * inv_b - mean * mean, 0.0)   # clamp vs. cancellation

        # Collapse normalize + affine into one per-feature scale/shift, then a
        # single FMA-shaped pass over the [B, dout] tile.
        scale = gamma_ref[...] * jax.lax.rsqrt(var + BN_EPS)
        shift = beta_ref[...] - mean * scale
        h = y * scale + shift
        # Dropout(p=0.0) is the identity -> nothing to do.

    o_ref[...] = h.astype(o_ref.dtype)


def mlp_forward(x, params):
    """Pad to TPU tile granularity and run the whole MLP in one pallas_call."""
    B, in_dim = x.shape
    num_layers = len(params)
    dims = [in_dim] + [w.shape[1] for (w, _, _, _) in params]

    B_pad = _round_up(B, SUBLANE)
    dims_pad = [_round_up(d, LANE) for d in dims]

    # Pad input: zeros in padded rows/cols.
    x_p = jnp.zeros((B_pad, dims_pad[0]), jnp.float32).at[:B, :in_dim].set(x)

    # Pad params. Padded weight rows/cols and biases are 0, gamma pads to 1,
    # beta pads to 0 => padded feature columns stay exactly zero layer-to-layer.
    padded = []
    in_specs = [pl.BlockSpec((B_pad, dims_pad[0]), lambda i: (0, 0))]
    for li, (w, b, g, be) in enumerate(params):
        din, dout = w.shape
        din_p, dout_p = dims_pad[li], dims_pad[li + 1]
        w_p = jnp.zeros((din_p, dout_p), jnp.float32).at[:din, :dout].set(w)
        b_p = jnp.zeros((1, dout_p), jnp.float32).at[:, :dout].set(b)
        g_p = jnp.ones((1, dout_p), jnp.float32).at[:, :dout].set(g)
        be_p = jnp.zeros((1, dout_p), jnp.float32).at[:, :dout].set(be)
        padded.extend([w_p, b_p, g_p, be_p])
        in_specs.extend([
            pl.BlockSpec((din_p, dout_p), lambda i: (0, 0)),
            pl.BlockSpec((1, dout_p), lambda i: (0, 0)),
            pl.BlockSpec((1, dout_p), lambda i: (0, 0)),
            pl.BlockSpec((1, dout_p), lambda i: (0, 0)),
        ])

    dout_last_p = dims_pad[-1]
    kernel = partial(fused_mlp_kernel,
                     num_layers=num_layers, b_real=B, b_pad=B_pad)

    out_p = pl.pallas_call(
        kernel,
        out_shape=jax.ShapeDtypeStruct((B_pad, dout_last_p), x.dtype),
        grid=(1,),
        in_specs=in_specs,
        out_specs=pl.BlockSpec((B_pad, dout_last_p), lambda i: (0, 0)),
        compiler_params=pltpu.CompilerParams(
            dimension_semantics=("arbitrary",),
        ),
    )(x_p, *padded)

    # TODO(synk): for layer widths > VMEM, tile the grid over dout/K with
    # 128/256-wide BlockSpecs (keeping the full batch per block so BN stats
    # stay exact) and mark the dout axis "parallel" for dual-TC v7x.
    return out_p[:B, :dims[-1]]


def init_mlp_params(key, in_dim, layer_dims):
    """Deterministic params matching the PyTorch __init__."""
    params = []
    din = in_dim
    for dout in layer_dims:
        key, wk = jax.random.split(key)
        # torch.nn.init.xavier_normal_(weight, gain=sqrt(2)):
        #   std = gain * sqrt(2 / (fan_in + fan_out))
        std = math.sqrt(2.0) * math.sqrt(2.0 / (din + dout))
        # torch Linear weight is [dout, din]; store transposed [din, dout].
        w = (jax.random.normal(wk, (dout, din), dtype=jnp.float32) * std).T
        b = jnp.zeros((1, dout), dtype=jnp.float32)       # Linear bias = 0
        gamma = jnp.ones((1, dout), dtype=jnp.float32)    # BN weight = 1
        beta = jnp.zeros((1, dout), dtype=jnp.float32)    # BN bias = 0
        params.append((w, b, gamma, beta))
        din = dout
    return params


def mlp_forward_ref(x, params):
    """Pure-JAX reference (unpadded) for correctness checking."""
    for (w, b, gamma, beta) in params:
        y = x @ w + b
        y = jnp.maximum(y, 0.0)
        mean = jnp.mean(y, axis=0, keepdims=True)
        var = jnp.mean(jnp.square(y - mean), axis=0, keepdims=True)
        x = (y - mean) / jnp.sqrt(var + BN_EPS) * gamma + beta
    return x


if __name__ == "__main__":
    B, in_dim = 8, 16
    layer_dims = [32, 32]

    key = jax.random.PRNGKey(0)
    key, xk = jax.random.split(key)
    x = jax.random.normal(xk, (B, in_dim), dtype=jnp.float32)
    params = init_mlp_params(key, in_dim, layer_dims)

    out = mlp_forward(x, params)
    out = jax.block_until_ready(out)

    ref = mlp_forward_ref(x, params)
    assert out.shape == (B, layer_dims[-1]), out.shape
    assert jnp.allclose(out, ref, atol=1e-4, rtol=1e-4), (
        float(jnp.max(jnp.abs(out - ref)))
    )
    print("KERNEL_OK")
</pallas_src>

<mosaic_0001>
module attributes {stable_mosaic.version = 11 : i64} {
  func.func @fused_mlp_kernel(%arg0: i32, %arg1: memref<8x128xf32, #tpu.memory_space<vmem>>, %arg2: memref<128x128xf32, #tpu.memory_space<vmem>>, %arg3: memref<1x128xf32, #tpu.memory_space<vmem>>, %arg4: memref<1x128xf32, #tpu.memory_space<vmem>>, %arg5: memref<1x128xf32, #tpu.memory_space<vmem>>, %arg6: memref<128x128xf32, #tpu.memory_space<vmem>>, %arg7: memref<1x128xf32, #tpu.memory_space<vmem>>, %arg8: memref<1x128xf32, #tpu.memory_space<vmem>>, %arg9: memref<1x128xf32, #tpu.memory_space<vmem>>, %arg10: memref<8x128xf32, #tpu.memory_space<vmem>>) attributes {dimension_semantics = [#tpu.dimension_semantics<arbitrary>], iteration_bounds = array<i64: 1>, scalar_prefetch = 0 : i64, scratch_operands = 0 : i64, tpu.core_type = #tpu.core_type<tc>, window_params = [{pipeline_mode = #tpu.pipeline_mode<synchronous>, transform_indices = @transform_0, window_bounds = array<i64: 8, 128>}, {pipeline_mode = #tpu.pipeline_mode<synchronous>, transform_indices = @transform_1, window_bounds = array<i64: 128, 128>}, {pipeline_mode = #tpu.pipeline_mode<synchronous>, transform_indices = @transform_2, window_bounds = array<i64: 1, 128>}, {pipeline_mode = #tpu.pipeline_mode<synchronous>, transform_indices = @transform_3, window_bounds = array<i64: 1, 128>}, {pipeline_mode = #tpu.pipeline_mode<synchronous>, transform_indices = @transform_4, window_bounds = array<i64: 1, 128>}, {pipeline_mode = #tpu.pipeline_mode<synchronous>, transform_indices = @transform_5, window_bounds = array<i64: 128, 128>}, {pipeline_mode = #tpu.pipeline_mode<synchronous>, transform_indices = @transform_6, window_bounds = array<i64: 1, 128>}, {pipeline_mode = #tpu.pipeline_mode<synchronous>, transform_indices = @transform_7, window_bounds = array<i64: 1, 128>}, {pipeline_mode = #tpu.pipeline_mode<synchronous>, transform_indices = @transform_8, window_bounds = array<i64: 1, 128>}, {pipeline_mode = #tpu.pipeline_mode<synchronous>, transform_indices = @transform_9, window_bounds = array<i64: 8, 128>}]} {
    %c0 = arith.constant 0 : index
    %c0_0 = arith.constant 0 : index
    %0 = vector.load %arg1[%c0, %c0_0] : memref<8x128xf32, #tpu.memory_space<vmem>>, vector<8x128xf32>
    %c0_1 = arith.constant 0 : index
    %c0_2 = arith.constant 0 : index
    %1 = vector.load %arg2[%c0_1, %c0_2] : memref<128x128xf32, #tpu.memory_space<vmem>>, vector<128x128xf32>
    %cst = arith.constant dense<0.000000e+00> : vector<8x128xf32>
    %2 = tpu.matmul %0, %1, %cst {dimension_numbers = #tpu.dot_dimension_numbers<[1], [0], [0], [1], [0, 0, 1, 1], [], []>} : vector<8x128xf32>, vector<128x128xf32>, vector<8x128xf32> -> vector<8x128xf32>
    %c0_3 = arith.constant 0 : index
    %c0_4 = arith.constant 0 : index
    %3 = vector.load %arg3[%c0_3, %c0_4] : memref<1x128xf32, #tpu.memory_space<vmem>>, vector<1x128xf32>
    %4 = vector.broadcast %3 : vector<1x128xf32> to vector<8x128xf32>
    %5 = arith.addf %2, %4 : vector<8x128xf32>
    %cst_5 = arith.constant 0.000000e+00 : f32
    %6 = vector.broadcast %cst_5 : f32 to vector<8x128xf32>
    %7 = arith.maximumf %5, %6 : vector<8x128xf32>
    %cst_6 = arith.constant dense<0.000000e+00> : vector<128xf32>
    %8 = vector.multi_reduction <add>, %7, %cst_6 [0] : vector<8x128xf32> to vector<128xf32>
    %9 = vector.shape_cast %8 : vector<128xf32> to vector<1x128xf32>
    %10 = arith.mulf %7, %7 : vector<8x128xf32>
    %cst_7 = arith.constant dense<0.000000e+00> : vector<128xf32>
    %11 = vector.multi_reduction <add>, %10, %cst_7 [0] : vector<8x128xf32> to vector<128xf32>
    %12 = vector.shape_cast %11 : vector<128xf32> to vector<1x128xf32>
    %cst_8 = arith.constant 1.250000e-01 : f32
    %13 = vector.broadcast %cst_8 : f32 to vector<1x128xf32>
    %14 = arith.mulf %9, %13 : vector<1x128xf32>
    %cst_9 = arith.constant 1.250000e-01 : f32
    %15 = vector.broadcast %cst_9 : f32 to vector<1x128xf32>
    %16 = arith.mulf %12, %15 : vector<1x128xf32>
    %17 = arith.mulf %14, %14 : vector<1x128xf32>
    %18 = arith.subf %16, %17 : vector<1x128xf32>
    %cst_10 = arith.constant 0.000000e+00 : f32
    %19 = vector.broadcast %cst_10 : f32 to vector<1x128xf32>
    %20 = arith.maximumf %18, %19 : vector<1x128xf32>
    %c0_11 = arith.constant 0 : index
    %c0_12 = arith.constant 0 : index
    %21 = vector.load %arg4[%c0_11, %c0_12] : memref<1x128xf32, #tpu.memory_space<vmem>>, vector<1x128xf32>
    %cst_13 = arith.constant 9.99999974E-6 : f32
    %22 = vector.broadcast %cst_13 : f32 to vector<1x128xf32>
    %23 = arith.addf %20, %22 : vector<1x128xf32>
    %24 = math.rsqrt %23 : vector<1x128xf32>
    %25 = arith.mulf %21, %24 : vector<1x128xf32>
    %c0_14 = arith.constant 0 : index
    %c0_15 = arith.constant 0 : index
    %26 = vector.load %arg5[%c0_14, %c0_15] : memref<1x128xf32, #tpu.memory_space<vmem>>, vector<1x128xf32>
    %27 = arith.mulf %14, %25 : vector<1x128xf32>
    %28 = arith.subf %26, %27 : vector<1x128xf32>
    %29 = vector.broadcast %25 : vector<1x128xf32> to vector<8x128xf32>
    %30 = arith.mulf %7, %29 : vector<8x128xf32>
    %31 = vector.broadcast %28 : vector<1x128xf32> to vector<8x128xf32>
    %32 = arith.addf %30, %31 : vector<8x128xf32>
    %c0_16 = arith.constant 0 : index
    %c0_17 = arith.constant 0 : index
    %33 = vector.load %arg6[%c0_16, %c0_17] : memref<128x128xf32, #tpu.memory_space<vmem>>, vector<128x128xf32>
    %cst_18 = arith.constant dense<0.000000e+00> : vector<8x128xf32>
    %34 = tpu.matmul %32, %33, %cst_18 {dimension_numbers = #tpu.dot_dimension_numbers<[1], [0], [0], [1], [0, 0, 1, 1], [], []>} : vector<8x128xf32>, vector<128x128xf32>, vector<8x128xf32> -> vector<8x128xf32>
    %c0_19 = arith.constant 0 : index
    %c0_20 = arith.constant 0 : index
    %35 = vector.load %arg7[%c0_19, %c0_20] : memref<1x128xf32, #tpu.memory_space<vmem>>, vector<1x128xf32>
    %36 = vector.broadcast %35 : vector<1x128xf32> to vector<8x128xf32>
    %37 = arith.addf %34, %36 : vector<8x128xf32>
    %cst_21 = arith.constant 0.000000e+00 : f32
    %38 = vector.broadcast %cst_21 : f32 to vector<8x128xf32>
    %39 = arith.maximumf %37, %38 : vector<8x128xf32>
    %cst_22 = arith.constant dense<0.000000e+00> : vector<128xf32>
    %40 = vector.multi_reduction <add>, %39, %cst_22 [0] : vector<8x128xf32> to vector<128xf32>
    %41 = vector.shape_cast %40 : vector<128xf32> to vector<1x128xf32>
    %42 = arith.mulf %39, %39 : vector<8x128xf32>
    %cst_23 = arith.constant dense<0.000000e+00> : vector<128xf32>
    %43 = vector.multi_reduction <add>, %42, %cst_23 [0] : vector<8x128xf32> to vector<128xf32>
    %44 = vector.shape_cast %43 : vector<128xf32> to vector<1x128xf32>
    %cst_24 = arith.constant 1.250000e-01 : f32
    %45 = vector.broadcast %cst_24 : f32 to vector<1x128xf32>
    %46 = arith.mulf %41, %45 : vector<1x128xf32>
    %cst_25 = arith.constant 1.250000e-01 : f32
    %47 = vector.broadcast %cst_25 : f32 to vector<1x128xf32>
    %48 = arith.mulf %44, %47 : vector<1x128xf32>
    %49 = arith.mulf %46, %46 : vector<1x128xf32>
    %50 = arith.subf %48, %49 : vector<1x128xf32>
    %cst_26 = arith.constant 0.000000e+00 : f32
    %51 = vector.broadcast %cst_26 : f32 to vector<1x128xf32>
    %52 = arith.maximumf %50, %51 : vector<1x128xf32>
    %c0_27 = arith.constant 0 : index
    %c0_28 = arith.constant 0 : index
    %53 = vector.load %arg8[%c0_27, %c0_28] : memref<1x128xf32, #tpu.memory_space<vmem>>, vector<1x128xf32>
    %cst_29 = arith.constant 9.99999974E-6 : f32
    %54 = vector.broadcast %cst_29 : f32 to vector<1x128xf32>
    %55 = arith.addf %52, %54 : vector<1x128xf32>
    %56 = math.rsqrt %55 : vector<1x128xf32>
    %57 = arith.mulf %53, %56 : vector<1x128xf32>
    %c0_30 = arith.constant 0 : index
    %c0_31 = arith.constant 0 : index
    %58 = vector.load %arg9[%c0_30, %c0_31] : memref<1x128xf32, #tpu.memory_space<vmem>>, vector<1x128xf32>
    %59 = arith.mulf %46, %57 : vector<1x128xf32>
    %60 = arith.subf %58, %59 : vector<1x128xf32>
    %61 = vector.broadcast %57 : vector<1x128xf32> to vector<8x128xf32>
    %62 = arith.mulf %39, %61 : vector<8x128xf32>
    %63 = vector.broadcast %60 : vector<1x128xf32> to vector<8x128xf32>
    %64 = arith.addf %62, %63 : vector<8x128xf32>
    %c0_32 = arith.constant 0 : index
    %c0_33 = arith.constant 0 : index
    %65 = vector.load %arg10[%c0_32, %c0_33] : memref<8x128xf32, #tpu.memory_space<vmem>>, vector<8x128xf32>
    tpu.vector_store %arg10[%c0_32, %c0_33], %64 {strides = array<i32>} : memref<8x128xf32, #tpu.memory_space<vmem>>, vector<8x128xf32>,
    return
  }
  func.func @transform_0(%arg0: i32) -> (i32, i32) {
    %c0_i32 = arith.constant 0 : i32
    %c0_i32_0 = arith.constant 0 : i32
    %c0_i32_1 = arith.constant 0 : i32
    return %c0_i32, %c0_i32_0 : i32, i32
  }
  func.func @transform_1(%arg0: i32) -> (i32, i32) {
    %c0_i32 = arith.constant 0 : i32
    %c0_i32_0 = arith.constant 0 : i32
    %c0_i32_1 = arith.constant 0 : i32
    return %c0_i32, %c0_i32_0 : i32, i32
  }
  func.func @transform_2(%arg0: i32) -> (i32, i32) {
    %c0_i32 = arith.constant 0 : i32
    %c0_i32_0 = arith.constant 0 : i32
    %c0_i32_1 = arith.constant 0 : i32
    return %c0_i32, %c0_i32_0 : i32, i32
  }
  func.func @transform_3(%arg0: i32) -> (i32, i32) {
    %c0_i32 = arith.constant 0 : i32
    %c0_i32_0 = arith.constant 0 : i32
    %c0_i32_1 = arith.constant 0 : i32
    return %c0_i32, %c0_i32_0 : i32, i32
  }
  func.func @transform_4(%arg0: i32) -> (i32, i32) {
    %c0_i32 = arith.constant 0 : i32
    %c0_i32_0 = arith.constant 0 : i32
    %c0_i32_1 = arith.constant 0 : i32
    return %c0_i32, %c0_i32_0 : i32, i32
  }
  func.func @transform_5(%arg0: i32) -> (i32, i32) {
    %c0_i32 = arith.constant 0 : i32
    %c0_i32_0 = arith.constant 0 : i32
    %c0_i32_1 = arith.constant 0 : i32
    return %c0_i32, %c0_i32_0 : i32, i32
  }
  func.func @transform_6(%arg0: i32) -> (i32, i32) {
    %c0_i32 = arith.constant 0 : i32
    %c0_i32_0 = arith.constant 0 : i32
    %c0_i32_1 = arith.constant 0 : i32
    return %c0_i32, %c0_i32_0 : i32, i32
  }
  func.func @transform_7(%arg0: i32) -> (i32, i32) {
    %c0_i32 = arith.constant 0 : i32
    %c0_i32_0 = arith.constant 0 : i32
    %c0_i32_1 = arith.constant 0 : i32
    return %c0_i32, %c0_i32_0 : i32, i32
  }
  func.func @transform_8(%arg0: i32) -> (i32, i32) {
    %c0_i32 = arith.constant 0 : i32
    %c0_i32_0 = arith.constant 0 : i32
    %c0_i32_1 = arith.constant 0 : i32
    return %c0_i32, %c0_i32_0 : i32, i32
  }
  func.func @transform_9(%arg0: i32) -> (i32, i32) {
    %c0_i32 = arith.constant 0 : i32
    %c0_i32_0 = arith.constant 0 : i32
    %c0_i32_1 = arith.constant 0 : i32
    return %c0_i32, %c0_i32_0 : i32, i32
  }
}

</mosaic_0001>

<llo_original>
// kernel: tpu_custom_call.1
$region0: #{tpu_custom_call.1}
  #allocation0 [shape = 'u32[]', space=smem, size = 0x4, offset = 0x4, fixed_abs, tag = 'smem constant byte address 0x4 - core index']
  #allocation1 [shape = 'u32[144,128]{1,0:T(1,128)}', space=vmem, size = 0x12000, scoped, tag = 'internal scratch']
  %s0 = inlined_call_operand.hbm [shape: f32[8,128], index: 0, kind: input, shape index: {}]
  %s1 = inlined_call_operand.hbm [shape: f32[128,128], index: 1, kind: input, shape index: {}]
  %s2 = inlined_call_operand.vmem [shape: f32[1,128], index: 2, kind: input, shape index: {}]
  %s3 = inlined_call_operand.vmem [shape: f32[1,128], index: 3, kind: input, shape index: {}]
  %s4 = inlined_call_operand.vmem [shape: f32[1,128], index: 4, kind: input, shape index: {}]
  %s5 = inlined_call_operand.hbm [shape: f32[128,128], index: 5, kind: input, shape index: {}]
  %s6 = inlined_call_operand.vmem [shape: f32[1,128], index: 6, kind: input, shape index: {}]
  %s7 = inlined_call_operand.vmem [shape: f32[1,128], index: 7, kind: input, shape index: {}]
  %s8 = inlined_call_operand.vmem [shape: f32[1,128], index: 8, kind: input, shape index: {}]
  %s9 = inlined_call_operand.hbm [shape: f32[8,128], index: 9, kind: output, shape index: {}]
  %s10 = sld [smem:[#allocation0]]
  $region58: #{tpu_custom_call.1} parent=0
    _
  %s12 = ssub.s32 1, %s10
  %s13 = scalar_select 0, %s12, %s10
  $region1: #{tpu_custom_call.1} parent=0
    #allocation2 [shape = 'u8[4096]{0}', space=vmem, size = 0x1000, scoped, tag = 'input window, operand 0, single buffered']
    #allocation3 [shape = 's32[1]{0}', space=sflag, size = 0x4, scoped, tag = 'scoped memory for tpu_custom_call.1']
    #allocation4 [shape = 's32[1]{0}', space=sflag, size = 0x4, scoped, tag = 'scoped memory for tpu_custom_call.1']
    #allocation5 [shape = 'u8[65536]{0}', space=vmem, size = 0x10000, scoped, tag = 'input window, operand 1, single buffered']
    #allocation6 [shape = 's32[1]{0}', space=sflag, size = 0x4, scoped, tag = 'scoped memory for tpu_custom_call.1']
    #allocation7 [shape = 'u8[65536]{0}', space=vmem, size = 0x10000, scoped, tag = 'input window, operand 5, single buffered']
    #allocation8 [shape = 'u8[4096]{0}', space=vmem, size = 0x1000, scoped, tag = 'output window, operand 0, single buffered']
    %14 = vsyncpa [#allocation3], 0
    %15 = vsyncpa [#allocation6], 0
    %16 = vsyncpa [#allocation4], 0
    // Predicated region
    $region2: #{tpu_custom_call.1} parent=1 // pred_check
      _
    $region3: #{tpu_custom_call.1} parent=1 // pred_check_branch
      %18 = sbr.rel (0) target = $region5
    $region4: #{tpu_custom_call.1} parent=1 // pred_region
      %s20 = ssub.s32 128, 128
      %21 = vsyncadd [#allocation3], %s20
      %s23 = sshll.u32 [#allocation2], 4
      %s24 = int_to_ptr.vmem [resolvable:$true] %s23
      %26 = dma.hbm_to_vmem [thread:$0]  %s0, 128, %s24, [#allocation3]
    $region5: #{tpu_custom_call.1} parent=1 // pred_fallthru
      _
    // Predicated region
    $region6: #{tpu_custom_call.1} parent=1 // pred_check
      _
    $region7: #{tpu_custom_call.1} parent=1 // pred_check_branch
      %28 = sbr.rel (0) target = $region9
    $region8: #{tpu_custom_call.1} parent=1 // pred_region
      %s30 = ssub.s32 2048, 2048
      %31 = vsyncadd [#allocation6], %s30
      %s32 = sshll.u32 [#allocation5], 4
      %s33 = int_to_ptr.vmem [resolvable:$true] %s32
      %38 = dma.hbm_to_vmem [thread:$0]  %s1, 2048, %s33, [#allocation6], 128, 128, 8
    $region9: #{tpu_custom_call.1} parent=1 // pred_fallthru
      _
    // Predicated region
    $region10: #{tpu_custom_call.1} parent=1 // pred_check
      _
    $region11: #{tpu_custom_call.1} parent=1 // pred_check_branch
      %40 = sbr.rel (0) target = $region13
    $region12: #{tpu_custom_call.1} parent=1 // pred_region
      _
    $region13: #{tpu_custom_call.1} parent=1 // pred_fallthru
      _
    // Predicated region
    $region14: #{tpu_custom_call.1} parent=1 // pred_check
      _
    $region15: #{tpu_custom_call.1} parent=1 // pred_check_branch
      %42 = sbr.rel (0) target = $region17
    $region16: #{tpu_custom_call.1} parent=1 // pred_region
      _
    $region17: #{tpu_custom_call.1} parent=1 // pred_fallthru
      _
    // Predicated region
    $region18: #{tpu_custom_call.1} parent=1 // pred_check
      _
    $region19: #{tpu_custom_call.1} parent=1 // pred_check_branch
      %44 = sbr.rel (0) target = $region21
    $region20: #{tpu_custom_call.1} parent=1 // pred_region
      _
    $region21: #{tpu_custom_call.1} parent=1 // pred_fallthru
      _
    // Predicated region
    $region22: #{tpu_custom_call.1} parent=1 // pred_check
      _
    $region23: #{tpu_custom_call.1} parent=1 // pred_check_branch
      %46 = sbr.rel (0) target = $region25
    $region24: #{tpu_custom_call.1} parent=1 // pred_region
      %s48 = ssub.s32 2048, 2048
      %49 = vsyncadd [#allocation6], %s48
      %s50 = sshll.u32 [#allocation7], 4
      %s51 = int_to_ptr.vmem [resolvable:$true] %s50
      %56 = dma.hbm_to_vmem [thread:$0]  %s5, 2048, %s51, [#allocation6], 128, 128, 8
    $region25: #{tpu_custom_call.1} parent=1 // pred_fallthru
      _
    // Predicated region
    $region26: #{tpu_custom_call.1} parent=1 // pred_check
      _
    $region27: #{tpu_custom_call.1} parent=1 // pred_check_branch
      %58 = sbr.rel (0) target = $region29
    $region28: #{tpu_custom_call.1} parent=1 // pred_region
      _
    $region29: #{tpu_custom_call.1} parent=1 // pred_fallthru
      _
    // Predicated region
    $region30: #{tpu_custom_call.1} parent=1 // pred_check
      _
    $region31: #{tpu_custom_call.1} parent=1 // pred_check_branch
      %60 = sbr.rel (0) target = $region33
    $region32: #{tpu_custom_call.1} parent=1 // pred_region
      _
    $region33: #{tpu_custom_call.1} parent=1 // pred_fallthru
      _
    // Predicated region
    $region34: #{tpu_custom_call.1} parent=1 // pred_check
      _
    $region35: #{tpu_custom_call.1} parent=1 // pred_check_branch
      %62 = sbr.rel (0) target = $region37
    $region36: #{tpu_custom_call.1} parent=1 // pred_region
      _
    $region37: #{tpu_custom_call.1} parent=1 // pred_fallthru
      _
    // Predicated region
    $region38: #{tpu_custom_call.1} parent=1 // pred_check
      _
    $region39: #{tpu_custom_call.1} parent=1 // pred_check_branch
      %64 = sbr.rel (0) target = $region41
    $region40: #{tpu_custom_call.1} parent=1 // pred_region
      %65 = dma.done [#allocation3], 128
    $region41: #{tpu_custom_call.1} parent=1 // pred_fallthru
      _
    // Predicated region
    $region42: #{tpu_custom_call.1} parent=1 // pred_check
      _
    $region43: #{tpu_custom_call.1} parent=1 // pred_check_branch
      %67 = sbr.rel (0) target = $region45
    $region44: #{tpu_custom_call.1} parent=1 // pred_region
      %68 = dma.done [#allocation6], 2048
    $region45: #{tpu_custom_call.1} parent=1 // pred_fallthru
      _
    // Predicated region
    $region46: #{tpu_custom_call.1} parent=1 // pred_check
      _
    $region47: #{tpu_custom_call.1} parent=1 // pred_check_branch
      %70 = sbr.rel (0) target = $region49
    $region48: #{tpu_custom_call.1} parent=1 // pred_region
      %71 = dma.done [#allocation6], 2048
    $region49: #{tpu_custom_call.1} parent=1 // pred_fallthru
      _
    %v72 = vld [vmem:[#allocation2] sm:$0xff]
    %v73 = vld [vmem:[#allocation5] sm:$0xff]
    %v74 = vld [vmem:[#allocation5 + $0x8] sm:$0xff]
    %v75 = vld [vmem:[#allocation5 + $0x10] sm:$0xff]
    %v76 = vld [vmem:[#allocation5 + $0x18] sm:$0xff]
    %v77 = vld [vmem:[#allocation5 + $0x20] sm:$0xff]
    %v78 = vld [vmem:[#allocation5 + $0x28] sm:$0xff]
    %v79 = vld [vmem:[#allocation5 + $0x30] sm:$0xff]
    %v80 = vld [vmem:[#allocation5 + $0x38] sm:$0xff]
    %v81 = vld [vmem:[#allocation5 + $0x40] sm:$0xff]
    %v82 = vld [vmem:[#allocation5 + $0x48] sm:$0xff]
    %v83 = vld [vmem:[#allocation5 + $0x50] sm:$0xff]
    %v84 = vld [vmem:[#allocation5 + $0x58] sm:$0xff]
    %v85 = vld [vmem:[#allocation5 + $0x60] sm:$0xff]
    %v86 = vld [vmem:[#allocation5 + $0x68] sm:$0xff]
    %v87 = vld [vmem:[#allocation5 + $0x70] sm:$0xff]
    %v88 = vld [vmem:[#allocation5 + $0x78] sm:$0xff]
    %v89 = vld [vmem:[%s2] sm:$0x1]
    %v91 = vlaneseq
    %v92 = vshrl.u32 %v91, 7
    %v93 = vsub.s32 0, %v92
    %v94 = vrot.slane %v89, %v93
    %96 = vmatprep.subr.mxu0 0.0
    %97 = vmatpush1.msra.mxu0 %v73
    %98 = vmatprep.subr.mxu0 0.0
    %99 = vmatpush1.msra.mxu0 %v74
    %100 = vmatprep.subr.mxu0 0.0
    %101 = vmatpush1.msra.mxu0 %v75
    %102 = vmatprep.subr.mxu0 0.0
    %103 = vmatpush1.msra.mxu0 %v76
    %104 = vmatprep.subr.mxu0 0.0
    %105 = vmatpush1.msra.mxu0 %v77
    %106 = vmatprep.subr.mxu0 0.0
    %107 = vmatpush1.msra.mxu0 %v78
    %108 = vmatprep.subr.mxu0 0.0
    %109 = vmatpush1.msra.mxu0 %v79
    %110 = vmatprep.subr.mxu0 0.0
    %111 = vmatpush1.msra.mxu0 %v80
    %112 = vmatprep.subr.mxu0 0.0
    %113 = vmatpush1.msra.mxu0 %v81
    %114 = vmatprep.subr.mxu0 0.0
    %115 = vmatpush1.msra.mxu0 %v82
    %116 = vmatprep.subr.mxu0 0.0
    %117 = vmatpush1.msra.mxu0 %v83
    %118 = vmatprep.subr.mxu0 0.0
    %119 = vmatpush1.msra.mxu0 %v84
    %120 = vmatprep.subr.mxu0 0.0
    %121 = vmatpush1.msra.mxu0 %v85
    %122 = vmatprep.subr.mxu0 0.0
    %123 = vmatpush1.msra.mxu0 %v86
    %124 = vmatprep.subr.mxu0 0.0
    %125 = vmatpush1.msra.mxu0 %v87
    %126 = vmatprep.subr.mxu0 0.0
    %127 = vmatpush1.msra.mxu0 %v88
    %128 = vmatprep.subr.mxu0 0.0
    %129 = vmatpush1.msra.mxu0 0.0
    %130 = vmatprep.subr.mxu0 0.0
    %131 = vmatpush1.msra.mxu0 0.0
    %132 = vmatprep.subr.mxu0 0.0
    %133 = vmatpush1.msra.mxu0 0.0
    %134 = vmatprep.subr.mxu0 0.0
    %135 = vmatpush1.msra.mxu0 0.0
    %136 = vmatprep.subr.mxu0 0.0
    %137 = vmatpush1.msra.mxu0 0.0
    %138 = vmatprep.subr.mxu0 0.0
    %139 = vmatpush1.msra.mxu0 0.0
    %140 = vmatprep.subr.mxu0 0.0
    %141 = vmatpush1.msra.mxu0 0.0
    %142 = vmatprep.subr.mxu0 0.0
    %143 = vmatpush1.msra.mxu0 0.0
    %144 = vmatprep.subr.mxu0 0.0
    %145 = vmatpush1.msra.mxu0 0.0
    %146 = vmatprep.subr.mxu0 0.0
    %147 = vmatpush1.msra.mxu0 0.0
    %148 = vmatprep.subr.mxu0 0.0
    %149 = vmatpush1.msra.mxu0 0.0
    %150 = vmatprep.subr.mxu0 0.0
    %151 = vmatpush1.msra.mxu0 0.0
    %152 = vmatprep.subr.mxu0 0.0
    %153 = vmatpush1.msra.mxu0 0.0
    %154 = vmatprep.subr.mxu0 0.0
    %155 = vmatpush1.msra.mxu0 0.0
    %156 = vmatprep.subr.mxu0 0.0
    %157 = vmatpush1.msra.mxu0 0.0
    %158 = vmatprep.subr.mxu0 0.0
    %159 = vmatpush1.msra.mxu0 0.0
    %160 = vmatprep.mubr.f32.mxu0 0.0
    %161 = vmatmul.mubr.f32.gmra.mrb[0].mxu0 %v72
    %v162 = vpop.f32.mrb[0].mxu0
    %v163 = vadd.f32 %v94, %v162
    %v164 = vpop.f32.mrb[0].mxu0
    %165 = vdwg.mxu0
    %v166 = vmax.f32 %v163, 0.0
    %v167 = vrot.slane %v166, 4
    %v168 = vadd.f32 %v166, %v167
    %v169 = vrot.slane %v168, 2
    %v170 = vadd.f32 %v168, %v169
    %v171 = vrot.slane %v170, 1
    %v172 = vadd.f32 %v170, %v171
    %v173 = vmul.f32 %v166, %v166
    %v174 = vrot.slane %v173, 4
    %v175 = vadd.f32 %v173, %v174
    %v176 = vrot.slane %v175, 2
    %v177 = vadd.f32 %v175, %v176
    %v178 = vrot.slane %v177, 1
    %v179 = vadd.f32 %v177, %v178
    %v180 = vmul.f32 %v172, 0.125
    %v181 = vmul.f32 %v179, 0.125
    %v182 = vmul.f32 %v180, %v180
    %v183 = vsub.f32 %v181, %v182
    %v184 = vmax.f32 %v183, 0.0
    %v185 = vld [vmem:[%s3] sm:$0x1]
    %v186 = vadd.f32 %v184, 1e-05
    %v187 = vrsqrt.pop %v186
    %v188 = vmul.f32 %v185, %v187
    %v189 = vld [vmem:[%s4] sm:$0x1]
    %v190 = vmul.f32 %v180, %v188
    %v191 = vsub.f32 %v189, %v190
    %v193 = vlaneseq
    %v194 = vshrl.u32 %v193, 7
    %v195 = vsub.s32 0, %v194
    %v196 = vrot.slane %v188, %v195
    %v198 = vmul.f32 %v166, %v196
    %v200 = vlaneseq
    %v201 = vshrl.u32 %v200, 7
    %v202 = vsub.s32 0, %v201
    %v203 = vrot.slane %v191, %v202
    %v205 = vadd.f32 %v198, %v203
    %v206 = vld [vmem:[#allocation7] sm:$0xff]
    %v207 = vld [vmem:[#allocation7 + $0x8] sm:$0xff]
    %v208 = vld [vmem:[#allocation7 + $0x10] sm:$0xff]
    %v209 = vld [vmem:[#allocation7 + $0x18] sm:$0xff]
    %v210 = vld [vmem:[#allocation7 + $0x20] sm:$0xff]
    %v211 = vld [vmem:[#allocation7 + $0x28] sm:$0xff]
    %v212 = vld [vmem:[#allocation7 + $0x30] sm:$0xff]
    %v213 = vld [vmem:[#allocation7 + $0x38] sm:$0xff]
    %v214 = vld [vmem:[#allocation7 + $0x40] sm:$0xff]
    %v215 = vld [vmem:[#allocation7 + $0x48] sm:$0xff]
    %v216 = vld [vmem:[#allocation7 + $0x50] sm:$0xff]
    %v217 = vld [vmem:[#allocation7 + $0x58] sm:$0xff]
    %v218 = vld [vmem:[#allocation7 + $0x60] sm:$0xff]
    %v219 = vld [vmem:[#allocation7 + $0x68] sm:$0xff]
    %v220 = vld [vmem:[#allocation7 + $0x70] sm:$0xff]
    %v221 = vld [vmem:[#allocation7 + $0x78] sm:$0xff]
    %v222 = vld [vmem:[%s6] sm:$0x1]
    %v224 = vlaneseq
    %v225 = vshrl.u32 %v224, 7
    %v226 = vsub.s32 0, %v225
    %v227 = vrot.slane %v222, %v226
    %229 = vmatprep.subr.mxu0 0.0
    %230 = vmatpush1.msra.mxu0 %v206
    %231 = vmatprep.subr.mxu0 0.0
    %232 = vmatpush1.msra.mxu0 %v207
    %233 = vmatprep.subr.mxu0 0.0
    %234 = vmatpush1.msra.mxu0 %v208
    %235 = vmatprep.subr.mxu0 0.0
    %236 = vmatpush1.msra.mxu0 %v209
    %237 = vmatprep.subr.mxu0 0.0
    %238 = vmatpush1.msra.mxu0 %v210
    %239 = vmatprep.subr.mxu0 0.0
    %240 = vmatpush1.msra.mxu0 %v211
    %241 = vmatprep.subr.mxu0 0.0
    %242 = vmatpush1.msra.mxu0 %v212
    %243 = vmatprep.subr.mxu0 0.0
    %244 = vmatpush1.msra.mxu0 %v213
    %245 = vmatprep.subr.mxu0 0.0
    %246 = vmatpush1.msra.mxu0 %v214
    %247 = vmatprep.subr.mxu0 0.0
    %248 = vmatpush1.msra.mxu0 %v215
    %249 = vmatprep.subr.mxu0 0.0
    %250 = vmatpush1.msra.mxu0 %v216
    %251 = vmatprep.subr.mxu0 0.0
    %252 = vmatpush1.msra.mxu0 %v217
    %253 = vmatprep.subr.mxu0 0.0
    %254 = vmatpush1.msra.mxu0 %v218
    %255 = vmatprep.subr.mxu0 0.0
    %256 = vmatpush1.msra.mxu0 %v219
    %257 = vmatprep.subr.mxu0 0.0
    %258 = vmatpush1.msra.mxu0 %v220
    %259 = vmatprep.subr.mxu0 0.0
    %260 = vmatpush1.msra.mxu0 %v221
    %261 = vmatprep.subr.mxu0 0.0
    %262 = vmatpush1.msra.mxu0 0.0
    %263 = vmatprep.subr.mxu0 0.0
    %264 = vmatpush1.msra.mxu0 0.0
    %265 = vmatprep.subr.mxu0 0.0
    %266 = vmatpush1.msra.mxu0 0.0
    %267 = vmatprep.subr.mxu0 0.0
    %268 = vmatpush1.msra.mxu0 0.0
    %269 = vmatprep.subr.mxu0 0.0
    %270 = vmatpush1.msra.mxu0 0.0
    %271 = vmatprep.subr.mxu0 0.0
    %272 = vmatpush1.msra.mxu0 0.0
    %273 = vmatprep.subr.mxu0 0.0
    %274 = vmatpush1.msra.mxu0 0.0
    %275 = vmatprep.subr.mxu0 0.0
    %276 = vmatpush1.msra.mxu0 0.0
    %277 = vmatprep.subr.mxu0 0.0
    %278 = vmatpush1.msra.mxu0 0.0
    %279 = vmatprep.subr.mxu0 0.0
    %280 = vmatpush1.msra.mxu0 0.0
    %281 = vmatprep.subr.mxu0 0.0
    %282 = vmatpush1.msra.mxu0 0.0
    %283 = vmatprep.subr.mxu0 0.0
    %284 = vmatpush1.msra.mxu0 0.0
    %285 = vmatprep.subr.mxu0 0.0
    %286 = vmatpush1.msra.mxu0 0.0
    %287 = vmatprep.subr.mxu0 0.0
    %288 = vmatpush1.msra.mxu0 0.0
    %289 = vmatprep.subr.mxu0 0.0
    %290 = vmatpush1.msra.mxu0 0.0
    %291 = vmatprep.subr.mxu0 0.0
    %292 = vmatpush1.msra.mxu0 0.0
    %293 = vmatprep.mubr.f32.mxu0 0.0
    %294 = vmatmul.mubr.f32.gmra.mrb[0].mxu0 %v205
    %v295 = vpop.f32.mrb[0].mxu0
    %v296 = vadd.f32 %v227, %v295
    %v297 = vpop.f32.mrb[0].mxu0
    %298 = vdwg.mxu0
    %v299 = vmax.f32 %v296, 0.0
    %v300 = vrot.slane %v299, 4
    %v301 = vadd.f32 %v299, %v300
    %v302 = vrot.slane %v301, 2
    %v303 = vadd.f32 %v301, %v302
    %v304 = vrot.slane %v303, 1
    %v305 = vadd.f32 %v303, %v304
    %v306 = vmul.f32 %v299, %v299
    %v307 = vrot.slane %v306, 4
    %v308 = vadd.f32 %v306, %v307
    %v309 = vrot.slane %v308, 2
    %v310 = vadd.f32 %v308, %v309
    %v311 = vrot.slane %v310, 1
    %v312 = vadd.f32 %v310, %v311
    %v313 = vmul.f32 %v305, 0.125
    %v314 = vmul.f32 %v312, 0.125
    %v315 = vmul.f32 %v313, %v313
    %v316 = vsub.f32 %v314, %v315
    %v317 = vmax.f32 %v316, 0.0
    %v318 = vld [vmem:[%s7] sm:$0x1]
    %v319 = vadd.f32 %v317, 1e-05
    %v320 = vrsqrt.pop %v319
    %v321 = vmul.f32 %v318, %v320
    %v322 = vld [vmem:[%s8] sm:$0x1]
    %v323 = vmul.f32 %v313, %v321
    %v324 = vsub.f32 %v322, %v323
    %v326 = vlaneseq
    %v327 = vshrl.u32 %v326, 7
    %v328 = vsub.s32 0, %v327
    %v329 = vrot.slane %v321, %v328
    %v331 = vmul.f32 %v299, %v329
    %v333 = vlaneseq
    %v334 = vshrl.u32 %v333, 7
    %v335 = vsub.s32 0, %v334
    %v336 = vrot.slane %v324, %v335
    %v338 = vadd.f32 %v331, %v336
    %339 = vst [vmem:[#allocation8] sm:$0xff] %v338
    // Predicated region
    $region50: #{tpu_custom_call.1} parent=1 // pred_check
      _
    $region51: #{tpu_custom_call.1} parent=1 // pred_check_branch
      %341 = sbr.rel (0) target = $region53
    $region52: #{tpu_custom_call.1} parent=1 // pred_region
      %s343 = ssub.s32 128, 128
      %344 = vsyncadd [#allocation4], %s343
      %s346 = sshll.u32 [#allocation8], 4
      %s347 = int_to_ptr.vmem [resolvable:$true] %s346
      %349 = dma.vmem_to_hbm [thread:$0]  %s347, 128, %s9, [#allocation4]
    $region53: #{tpu_custom_call.1} parent=1 // pred_fallthru
      _
    // Predicated region
    $region54: #{tpu_custom_call.1} parent=1 // pred_check
      _
    $region55: #{tpu_custom_call.1} parent=1 // pred_check_branch
      %351 = sbr.rel (0) target = $region57
    $region56: #{tpu_custom_call.1} parent=1 // pred_region
      %352 = dma.done [#allocation4], 128
    $region57: #{tpu_custom_call.1} parent=1 // pred_fallthru
      _
    %353 = vsyncpa [#allocation3], 1
    %354 = vsyncpa [#allocation6], 1
    %355 = vsyncpa [#allocation4], 1

</llo_original>
